<compile_context>
chip_gen: v5e
topology: v5e:2x2
jax: 0.10.0
libtpu: 0.0.40
codegen_flags: <defaults>
</compile_context>

<pallas_src>
import functools

import jax
import jax.numpy as jnp
from jax.experimental import pallas as pl
from jax.experimental.pallas import tpu as pltpu

NEG_SLOPE = 0.01
BN_EPS = 1e-5
LANE = 128  # TPU lane width; hidden feature dims are host-padded to this


def _round_up(v, m):
    return ((v + m - 1) // m) * m


def ann_cal_kernel(x_ref,
                   w1_ref, b1_ref,
                   w2_ref, b2_ref,
                   w3_ref, b3_ref,
                   wh_ref, bh_ref,
                   out_ref, *, n_out, b_real, b_pad):
    inv_n = 1.0 / float(b_real)

    # Row-validity mask is only materialized when the batch was sublane-padded;
    # for B % 8 == 0 it costs nothing.
    if b_pad != b_real:
        row = jax.lax.broadcasted_iota(jnp.int32, (b_pad, 1), 0)
        row_mask = (row < b_real).astype(jnp.float32)
    else:
        row_mask = None

    def act_and_stats(z):
        h = jnp.maximum(z, NEG_SLOPE * z)                 # LeakyReLU (mul+max)
        if row_mask is not None:
            h = h * row_mask                              # zero padded rows (stats + feed-fwd)
        # One-pass BN stats; the two sublane reductions issue back-to-back.
        # NOTE: E[x^2]-mean^2 can cancel when |mean| >> std; inputs here are
        # roughly centered / post-BN, and the max(.,0) guard keeps rsqrt sane.
        s = jnp.sum(h, axis=0, keepdims=True)
        s2 = jnp.sum(h * h, axis=0, keepdims=True)
        mean = s * inv_n
        var = jnp.maximum(s2 * inv_n - mean * mean, 0.0)  # biased (1/N) variance
        inv_std = jax.lax.rsqrt(var + BN_EPS)             # gamma=1, beta=0
        return h, mean, inv_std

    def bn_folded_matmul(h, mean, inv_std, w_ref, b_ref):
        # BN(h) @ W + b  ==  (h * inv_std) @ W + (b - (mean * inv_std) @ W)
        # Half-fold: the per-element subtract becomes a tiny (1,F)@(F,F) MXU
        # matmul folded into the bias; only one per-element mul stays on the VPU.
        # TODO(synk): full weight-row fold (W * inv_std^T) would remove that mul
        # too, but needs a (1,128)->(128,1) in-kernel transpose; kept half-fold
        # for lowering robustness.
        w = w_ref[...]
        b_adj = b_ref[...] - jnp.dot(mean * inv_std, w,
                                     preferred_element_type=jnp.float32)
        return jnp.dot(h * inv_std, w, preferred_element_type=jnp.float32) + b_adj

    # Padded feature lanes stay exactly zero through every layer: zero weight
    # cols -> z=0 -> LeakyReLU(0)=0 -> zero mean -> zero folded-bias contribution.
    # TODO(synk): bf16 matmul operands (bf16-packed weights) would cut MXU passes
    # and DMA bytes; kept f32 to hold the tight reference tolerance.
    z1 = jnp.dot(x_ref[...], w1_ref[...], preferred_element_type=jnp.float32) + b1_ref[...]
    h1, m1, is1 = act_and_stats(z1)
    h2, m2, is2 = act_and_stats(bn_folded_matmul(h1, m1, is1, w2_ref, b2_ref))
    h3, m3, is3 = act_and_stats(bn_folded_matmul(h2, m2, is2, w3_ref, b3_ref))

    # Fused actor+critic head (BN3 folded in): lane 0 = critic value,
    # lanes 1..n_out = actor logits.
    head = bn_folded_matmul(h3, m3, is3, wh_ref, bh_ref)

    # Log-softmax over lanes 1..n_out; masks kept as (1, LANE) rows and
    # broadcast inside the wheres (no B x 128 iota/bool temporaries).
    lane = jax.lax.broadcasted_iota(jnp.int32, (1, LANE), 1)
    is_logit = jnp.logical_and(lane >= 1, lane <= n_out)
    masked = jnp.where(is_logit, head, jnp.float32(-1e30))
    m = jnp.max(masked, axis=-1, keepdims=True)
    e = jnp.exp(masked - m)                 # non-logit lanes underflow to exactly 0
    lse = jnp.log(jnp.sum(e, axis=-1, keepdims=True))
    logp = head - (m + lse)

    # Lane-dense combined output slab: [ value | log-probs | ignored padding ].
    out_ref[...] = jnp.where(lane == 0, head, logp)


def _pad_to(a, rows, cols):
    r, c = a.shape
    return jnp.pad(a, ((0, rows - r), (0, cols - c)))


def pack_params(params):
    """Pad hidden feature dims to 128 lanes and fuse the actor/critic heads.

    The input-feature (K) dim of w1 is only rounded up to a sublane multiple of
    8 so x can be passed at (near-)native width.
    """
    n_in = params["w1"].shape[0]
    n_out = params["wa"].shape[1]
    n_in_pad = _round_up(n_in, 8)

    w1 = _pad_to(params["w1"], n_in_pad, LANE)
    b1 = _pad_to(params["b1"], 1, LANE)
    w2 = _pad_to(params["w2"], LANE, LANE)
    b2 = _pad_to(params["b2"], 1, LANE)
    w3 = _pad_to(params["w3"], LANE, LANE)
    b3 = _pad_to(params["b3"], 1, LANE)
    # Fuse critic (50,1) and actor (50,n_out) into one (50, 1+n_out) matmul,
    # critic first so the value lands in lane 0 of the output slab.
    wh = _pad_to(jnp.concatenate([params["wc"], params["wa"]], axis=1), LANE, LANE)
    bh = _pad_to(jnp.concatenate([params["bc"], params["ba"]], axis=1), 1, LANE)
    return dict(w1=w1, b1=b1, w2=w2, b2=b2, w3=w3, b3=b3, wh=wh, bh=bh,
                n_in=n_in, n_in_pad=n_in_pad, n_out=n_out)


def _vmem_capacity_bytes():
    try:
        return int(pltpu.get_tpu_info().vmem_capacity_bytes)
    except Exception:
        return 64 << 20  # conservative: v7x physical per-TC; safe everywhere


def ann_cal_forward(x, packed):
    # TODO(synk): for B beyond the whole-batch-VMEM ceiling, add a batch-tile
    # grid ('parallel' batch axis for v7x's 2 TCs) with a two-pass BN (per-tile
    # sum/sumsq accumulation then normalize) -- per-tile BN stats would silently
    # change the result, so whole-batch stats must stay exact.
    B, n_in = x.shape
    assert n_in == packed["n_in"]
    n_out = packed["n_out"]
    n_in_pad = packed["n_in_pad"]
    b_pad = _round_up(B, 8)

    # Only pad when strictly necessary (keeps the common path copy-free).
    if n_in_pad != n_in or b_pad != B:
        x = jnp.pad(x, ((0, b_pad - B), (0, n_in_pad - n_in)))

    vmem_spec = pl.BlockSpec(memory_space=pltpu.MemorySpace.VMEM)
    args = (x,
            packed["w1"], packed["b1"],
            packed["w2"], packed["b2"],
            packed["w3"], packed["b3"],
            packed["wh"], packed["bh"])

    # Honest live-buffer estimate: x + ~7 (B,128) f32 slabs (h1..h3, head,
    # masked, logp, out) + weights/biases, with 1.5x slack for compiler temps.
    slab = b_pad * LANE * 4
    weight_bytes = (n_in_pad * LANE + 3 * LANE * LANE + 4 * LANE) * 4
    needed = b_pad * n_in_pad * 4 + 7 * slab + weight_bytes
    needed = int(needed * 1.5) + (4 << 20)
    cap = _vmem_capacity_bytes()
    vmem_limit = int(min(max(needed, 32 << 20), int(cap * 0.75)))

    flops = 2 * b_pad * (n_in_pad * LANE + 3 * LANE * LANE) + 3 * 2 * LANE * LANE
    transcendentals = b_pad * LANE + 3 * LANE + b_pad  # exp + rsqrt + log
    bytes_accessed = (b_pad * n_in_pad + b_pad * LANE) * 4 + weight_bytes
    cost = pl.CostEstimate(flops=flops, transcendentals=transcendentals,
                           bytes_accessed=bytes_accessed)

    kernel = functools.partial(ann_cal_kernel, n_out=n_out, b_real=B, b_pad=b_pad)
    out = pl.pallas_call(
        kernel,
        out_shape=jax.ShapeDtypeStruct((b_pad, LANE), jnp.float32),
        in_specs=[vmem_spec] * len(args),
        out_specs=vmem_spec,
        compiler_params=pltpu.CompilerParams(vmem_limit_bytes=vmem_limit),
        cost_estimate=cost,
    )(*args)

    value = out[:B, 0:1]
    probs = out[:B, 1:1 + n_out]
    return value, probs


def init_params(key, n_in, n_out):
    """Deterministic synthetic init (Kaiming-uniform-ish ranges), weights (in, out)."""
    def linear(k, fan_in, fan_out):
        kw, kb = jax.random.split(k)
        bound = 1.0 / jnp.sqrt(float(fan_in))
        w = jax.random.uniform(kw, (fan_in, fan_out), jnp.float32, -bound, bound)
        b = jax.random.uniform(kb, (1, fan_out), jnp.float32, -bound, bound)
        return w, b

    k1, k2, k3, ka, kc = jax.random.split(key, 5)
    w1, b1 = linear(k1, n_in, 10)
    w2, b2 = linear(k2, 10, 20)
    w3, b3 = linear(k3, 20, 50)
    wa, ba = linear(ka, 50, n_out)
    wc, bc = linear(kc, 50, 1)
    return dict(w1=w1, b1=b1, w2=w2, b2=b2, w3=w3, b3=b3,
                wa=wa, ba=ba, wc=wc, bc=bc)


def reference_forward(x, p):
    def bn(h):
        mean = jnp.mean(h, axis=0, keepdims=True)
        var = jnp.mean((h - mean) ** 2, axis=0, keepdims=True)
        return (h - mean) / jnp.sqrt(var + BN_EPS)

    def lrelu(h):
        return jnp.where(h > 0, h, NEG_SLOPE * h)

    h = bn(lrelu(x @ p["w1"] + p["b1"]))
    h = bn(lrelu(h @ p["w2"] + p["b2"]))
    h = bn(lrelu(h @ p["w3"] + p["b3"]))
    logits = h @ p["wa"] + p["ba"]
    probs = jax.nn.log_softmax(logits, axis=-1)
    value = h @ p["wc"] + p["bc"]
    return value, probs


if __name__ == "__main__":
    key = jax.random.PRNGKey(0)
    k_x, k_p = jax.random.split(key)

    B, N_IN, N_OUT = 8, 16, 4
    x = jax.random.normal(k_x, (B, N_IN), dtype=jnp.float32)
    params = init_params(k_p, N_IN, N_OUT)
    packed = pack_params(params)

    value, probs = ann_cal_forward(x, packed)
    jax.block_until_ready((value, probs))

    v_ref, p_ref = reference_forward(x, params)
    assert value.shape == (B, 1) and probs.shape == (B, N_OUT)
    assert jnp.allclose(value, v_ref, atol=2e-4, rtol=2e-4), \
        f"value mismatch: {jnp.max(jnp.abs(value - v_ref))}"
    assert jnp.allclose(probs, p_ref, atol=2e-4, rtol=2e-4), \
        f"probs mismatch: {jnp.max(jnp.abs(probs - p_ref))}"

    print("KERNEL_OK")
</pallas_src>

<mosaic_0001>
module attributes {stable_mosaic.version = 11 : i64} {
  func.func @ann_cal_kernel(%arg0: memref<8x16xf32, #tpu.memory_space<vmem>>, %arg1: memref<16x128xf32, #tpu.memory_space<vmem>>, %arg2: memref<1x128xf32, #tpu.memory_space<vmem>>, %arg3: memref<128x128xf32, #tpu.memory_space<vmem>>, %arg4: memref<1x128xf32, #tpu.memory_space<vmem>>, %arg5: memref<128x128xf32, #tpu.memory_space<vmem>>, %arg6: memref<1x128xf32, #tpu.memory_space<vmem>>, %arg7: memref<128x128xf32, #tpu.memory_space<vmem>>, %arg8: memref<1x128xf32, #tpu.memory_space<vmem>>, %arg9: memref<8x128xf32, #tpu.memory_space<vmem>>) attributes {dimension_semantics = [], scalar_prefetch = 0 : i64, scratch_operands = 0 : i64, tpu.core_type = #tpu.core_type<tc>} {
    %c0 = arith.constant 0 : index
    %c0_0 = arith.constant 0 : index
    %0 = vector.load %arg0[%c0, %c0_0] : memref<8x16xf32, #tpu.memory_space<vmem>>, vector<8x16xf32>
    %c0_1 = arith.constant 0 : index
    %c0_2 = arith.constant 0 : index
    %1 = vector.load %arg1[%c0_1, %c0_2] : memref<16x128xf32, #tpu.memory_space<vmem>>, vector<16x128xf32>
    %cst = arith.constant dense<0.000000e+00> : vector<8x128xf32>
    %2 = tpu.matmul %0, %1, %cst {dimension_numbers = #tpu.dot_dimension_numbers<[1], [0], [0], [1], [0, 0, 1, 1], [], []>} : vector<8x16xf32>, vector<16x128xf32>, vector<8x128xf32> -> vector<8x128xf32>
    %c0_3 = arith.constant 0 : index
    %c0_4 = arith.constant 0 : index
    %3 = vector.load %arg2[%c0_3, %c0_4] : memref<1x128xf32, #tpu.memory_space<vmem>>, vector<1x128xf32>
    %4 = vector.broadcast %3 : vector<1x128xf32> to vector<8x128xf32>
    %5 = arith.addf %2, %4 : vector<8x128xf32>
    %cst_5 = arith.constant 0.00999999977 : f32
    %6 = vector.broadcast %cst_5 : f32 to vector<8x128xf32>
    %7 = arith.mulf %6, %5 : vector<8x128xf32>
    %8 = arith.maximumf %5, %7 : vector<8x128xf32>
    %cst_6 = arith.constant dense<0.000000e+00> : vector<128xf32>
    %9 = vector.multi_reduction <add>, %8, %cst_6 [0] : vector<8x128xf32> to vector<128xf32>
    %10 = vector.shape_cast %9 : vector<128xf32> to vector<1x128xf32>
    %11 = arith.mulf %8, %8 : vector<8x128xf32>
    %cst_7 = arith.constant dense<0.000000e+00> : vector<128xf32>
    %12 = vector.multi_reduction <add>, %11, %cst_7 [0] : vector<8x128xf32> to vector<128xf32>
    %13 = vector.shape_cast %12 : vector<128xf32> to vector<1x128xf32>
    %cst_8 = arith.constant 1.250000e-01 : f32
    %14 = vector.broadcast %cst_8 : f32 to vector<1x128xf32>
    %15 = arith.mulf %10, %14 : vector<1x128xf32>
    %cst_9 = arith.constant 1.250000e-01 : f32
    %16 = vector.broadcast %cst_9 : f32 to vector<1x128xf32>
    %17 = arith.mulf %13, %16 : vector<1x128xf32>
    %18 = arith.mulf %15, %15 : vector<1x128xf32>
    %19 = arith.subf %17, %18 : vector<1x128xf32>
    %cst_10 = arith.constant 0.000000e+00 : f32
    %20 = vector.broadcast %cst_10 : f32 to vector<1x128xf32>
    %21 = arith.maximumf %19, %20 : vector<1x128xf32>
    %cst_11 = arith.constant 9.99999974E-6 : f32
    %22 = vector.broadcast %cst_11 : f32 to vector<1x128xf32>
    %23 = arith.addf %21, %22 : vector<1x128xf32>
    %24 = math.rsqrt %23 : vector<1x128xf32>
    %c0_12 = arith.constant 0 : index
    %c0_13 = arith.constant 0 : index
    %25 = vector.load %arg3[%c0_12, %c0_13] : memref<128x128xf32, #tpu.memory_space<vmem>>, vector<128x128xf32>
    %c0_14 = arith.constant 0 : index
    %c0_15 = arith.constant 0 : index
    %26 = vector.load %arg4[%c0_14, %c0_15] : memref<1x128xf32, #tpu.memory_space<vmem>>, vector<1x128xf32>
    %27 = arith.mulf %15, %24 : vector<1x128xf32>
    %cst_16 = arith.constant dense<0.000000e+00> : vector<1x128xf32>
    %28 = tpu.matmul %27, %25, %cst_16 {dimension_numbers = #tpu.dot_dimension_numbers<[1], [0], [0], [1], [0, 0, 1, 1], [], []>} : vector<1x128xf32>, vector<128x128xf32>, vector<1x128xf32> -> vector<1x128xf32>
    %29 = arith.subf %26, %28 : vector<1x128xf32>
    %30 = vector.broadcast %24 : vector<1x128xf32> to vector<8x128xf32>
    %31 = arith.mulf %8, %30 : vector<8x128xf32>
    %cst_17 = arith.constant dense<0.000000e+00> : vector<8x128xf32>
    %32 = tpu.matmul %31, %25, %cst_17 {dimension_numbers = #tpu.dot_dimension_numbers<[1], [0], [0], [1], [0, 0, 1, 1], [], []>} : vector<8x128xf32>, vector<128x128xf32>, vector<8x128xf32> -> vector<8x128xf32>
    %33 = vector.broadcast %29 : vector<1x128xf32> to vector<8x128xf32>
    %34 = arith.addf %32, %33 : vector<8x128xf32>
    %cst_18 = arith.constant 0.00999999977 : f32
    %35 = vector.broadcast %cst_18 : f32 to vector<8x128xf32>
    %36 = arith.mulf %35, %34 : vector<8x128xf32>
    %37 = arith.maximumf %34, %36 : vector<8x128xf32>
    %cst_19 = arith.constant dense<0.000000e+00> : vector<128xf32>
    %38 = vector.multi_reduction <add>, %37, %cst_19 [0] : vector<8x128xf32> to vector<128xf32>
    %39 = vector.shape_cast %38 : vector<128xf32> to vector<1x128xf32>
    %40 = arith.mulf %37, %37 : vector<8x128xf32>
    %cst_20 = arith.constant dense<0.000000e+00> : vector<128xf32>
    %41 = vector.multi_reduction <add>, %40, %cst_20 [0] : vector<8x128xf32> to vector<128xf32>
    %42 = vector.shape_cast %41 : vector<128xf32> to vector<1x128xf32>
    %cst_21 = arith.constant 1.250000e-01 : f32
    %43 = vector.broadcast %cst_21 : f32 to vector<1x128xf32>
    %44 = arith.mulf %39, %43 : vector<1x128xf32>
    %cst_22 = arith.constant 1.250000e-01 : f32
    %45 = vector.broadcast %cst_22 : f32 to vector<1x128xf32>
    %46 = arith.mulf %42, %45 : vector<1x128xf32>
    %47 = arith.mulf %44, %44 : vector<1x128xf32>
    %48 = arith.subf %46, %47 : vector<1x128xf32>
    %cst_23 = arith.constant 0.000000e+00 : f32
    %49 = vector.broadcast %cst_23 : f32 to vector<1x128xf32>
    %50 = arith.maximumf %48, %49 : vector<1x128xf32>
    %cst_24 = arith.constant 9.99999974E-6 : f32
    %51 = vector.broadcast %cst_24 : f32 to vector<1x128xf32>
    %52 = arith.addf %50, %51 : vector<1x128xf32>
    %53 = math.rsqrt %52 : vector<1x128xf32>
    %c0_25 = arith.constant 0 : index
    %c0_26 = arith.constant 0 : index
    %54 = vector.load %arg5[%c0_25, %c0_26] : memref<128x128xf32, #tpu.memory_space<vmem>>, vector<128x128xf32>
    %c0_27 = arith.constant 0 : index
    %c0_28 = arith.constant 0 : index
    %55 = vector.load %arg6[%c0_27, %c0_28] : memref<1x128xf32, #tpu.memory_space<vmem>>, vector<1x128xf32>
    %56 = arith.mulf %44, %53 : vector<1x128xf32>
    %cst_29 = arith.constant dense<0.000000e+00> : vector<1x128xf32>
    %57 = tpu.matmul %56, %54, %cst_29 {dimension_numbers = #tpu.dot_dimension_numbers<[1], [0], [0], [1], [0, 0, 1, 1], [], []>} : vector<1x128xf32>, vector<128x128xf32>, vector<1x128xf32> -> vector<1x128xf32>
    %58 = arith.subf %55, %57 : vector<1x128xf32>
    %59 = vector.broadcast %53 : vector<1x128xf32> to vector<8x128xf32>
    %60 = arith.mulf %37, %59 : vector<8x128xf32>
    %cst_30 = arith.constant dense<0.000000e+00> : vector<8x128xf32>
    %61 = tpu.matmul %60, %54, %cst_30 {dimension_numbers = #tpu.dot_dimension_numbers<[1], [0], [0], [1], [0, 0, 1, 1], [], []>} : vector<8x128xf32>, vector<128x128xf32>, vector<8x128xf32> -> vector<8x128xf32>
    %62 = vector.broadcast %58 : vector<1x128xf32> to vector<8x128xf32>
    %63 = arith.addf %61, %62 : vector<8x128xf32>
    %cst_31 = arith.constant 0.00999999977 : f32
    %64 = vector.broadcast %cst_31 : f32 to vector<8x128xf32>
    %65 = arith.mulf %64, %63 : vector<8x128xf32>
    %66 = arith.maximumf %63, %65 : vector<8x128xf32>
    %cst_32 = arith.constant dense<0.000000e+00> : vector<128xf32>
    %67 = vector.multi_reduction <add>, %66, %cst_32 [0] : vector<8x128xf32> to vector<128xf32>
    %68 = vector.shape_cast %67 : vector<128xf32> to vector<1x128xf32>
    %69 = arith.mulf %66, %66 : vector<8x128xf32>
    %cst_33 = arith.constant dense<0.000000e+00> : vector<128xf32>
    %70 = vector.multi_reduction <add>, %69, %cst_33 [0] : vector<8x128xf32> to vector<128xf32>
    %71 = vector.shape_cast %70 : vector<128xf32> to vector<1x128xf32>
    %cst_34 = arith.constant 1.250000e-01 : f32
    %72 = vector.broadcast %cst_34 : f32 to vector<1x128xf32>
    %73 = arith.mulf %68, %72 : vector<1x128xf32>
    %cst_35 = arith.constant 1.250000e-01 : f32
    %74 = vector.broadcast %cst_35 : f32 to vector<1x128xf32>
    %75 = arith.mulf %71, %74 : vector<1x128xf32>
    %76 = arith.mulf %73, %73 : vector<1x128xf32>
    %77 = arith.subf %75, %76 : vector<1x128xf32>
    %cst_36 = arith.constant 0.000000e+00 : f32
    %78 = vector.broadcast %cst_36 : f32 to vector<1x128xf32>
    %79 = arith.maximumf %77, %78 : vector<1x128xf32>
    %cst_37 = arith.constant 9.99999974E-6 : f32
    %80 = vector.broadcast %cst_37 : f32 to vector<1x128xf32>
    %81 = arith.addf %79, %80 : vector<1x128xf32>
    %82 = math.rsqrt %81 : vector<1x128xf32>
    %c0_38 = arith.constant 0 : index
    %c0_39 = arith.constant 0 : index
    %83 = vector.load %arg7[%c0_38, %c0_39] : memref<128x128xf32, #tpu.memory_space<vmem>>, vector<128x128xf32>
    %c0_40 = arith.constant 0 : index
    %c0_41 = arith.constant 0 : index
    %84 = vector.load %arg8[%c0_40, %c0_41] : memref<1x128xf32, #tpu.memory_space<vmem>>, vector<1x128xf32>
    %85 = arith.mulf %73, %82 : vector<1x128xf32>
    %cst_42 = arith.constant dense<0.000000e+00> : vector<1x128xf32>
    %86 = tpu.matmul %85, %83, %cst_42 {dimension_numbers = #tpu.dot_dimension_numbers<[1], [0], [0], [1], [0, 0, 1, 1], [], []>} : vector<1x128xf32>, vector<128x128xf32>, vector<1x128xf32> -> vector<1x128xf32>
    %87 = arith.subf %84, %86 : vector<1x128xf32>
    %88 = vector.broadcast %82 : vector<1x128xf32> to vector<8x128xf32>
    %89 = arith.mulf %66, %88 : vector<8x128xf32>
    %cst_43 = arith.constant dense<0.000000e+00> : vector<8x128xf32>
    %90 = tpu.matmul %89, %83, %cst_43 {dimension_numbers = #tpu.dot_dimension_numbers<[1], [0], [0], [1], [0, 0, 1, 1], [], []>} : vector<8x128xf32>, vector<128x128xf32>, vector<8x128xf32> -> vector<8x128xf32>
    %91 = vector.broadcast %87 : vector<1x128xf32> to vector<8x128xf32>
    %92 = arith.addf %90, %91 : vector<8x128xf32>
    %93 = tpu.iota {dimensions = array<i32: 1>} : vector<1x128xi32>
    %c1_i32 = arith.constant 1 : i32
    %94 = vector.broadcast %c1_i32 : i32 to vector<1x128xi32>
    %95 = arith.cmpi sge, %93, %94 : vector<1x128xi32>
    %c4_i32 = arith.constant 4 : i32
    %96 = vector.broadcast %c4_i32 : i32 to vector<1x128xi32>
    %97 = arith.cmpi sle, %93, %96 : vector<1x128xi32>
    %98 = arith.andi %95, %97 : vector<1x128xi1>
    %cst_44 = arith.constant -1.000000e+30 : f32
    %99 = vector.shape_cast %98 : vector<1x128xi1> to vector<1x128xi1>
    %100 = vector.broadcast %99 : vector<1x128xi1> to vector<8x128xi1>
    %101 = vector.broadcast %cst_44 : f32 to vector<8x128xf32>
    %102 = arith.select %100, %92, %101 : vector<8x128xi1>, vector<8x128xf32>
    %cst_45 = arith.constant dense<0xFF800000> : vector<8xf32>
    %103 = vector.multi_reduction <maximumf>, %102, %cst_45 [1] : vector<8x128xf32> to vector<8xf32>
    %104 = vector.shape_cast %103 : vector<8xf32> to vector<8x1xf32>
    %105 = vector.broadcast %104 : vector<8x1xf32> to vector<8x128xf32>
    %106 = arith.subf %102, %105 : vector<8x128xf32>
    %107 = math.exp %106 : vector<8x128xf32>
    %cst_46 = arith.constant dense<0.000000e+00> : vector<8xf32>
    %108 = vector.multi_reduction <add>, %107, %cst_46 [1] : vector<8x128xf32> to vector<8xf32>
    %109 = vector.shape_cast %108 : vector<8xf32> to vector<8x1xf32>
    %110 = math.log %109 : vector<8x1xf32>
    %111 = arith.addf %104, %110 : vector<8x1xf32>
    %112 = vector.broadcast %111 : vector<8x1xf32> to vector<8x128xf32>
    %113 = arith.subf %92, %112 : vector<8x128xf32>
    %c0_i32 = arith.constant 0 : i32
    %114 = vector.broadcast %c0_i32 : i32 to vector<1x128xi32>
    %115 = arith.cmpi eq, %93, %114 : vector<1x128xi32>
    %116 = vector.shape_cast %115 : vector<1x128xi1> to vector<1x128xi1>
    %117 = vector.broadcast %116 : vector<1x128xi1> to vector<8x128xi1>
    %118 = arith.select %117, %92, %113 : vector<8x128xi1>, vector<8x128xf32>
    %c0_47 = arith.constant 0 : index
    %c0_48 = arith.constant 0 : index
    %119 = vector.load %arg9[%c0_47, %c0_48] : memref<8x128xf32, #tpu.memory_space<vmem>>, vector<8x128xf32>
    tpu.vector_store %arg9[%c0_47, %c0_48], %118 {strides = array<i32>} : memref<8x128xf32, #tpu.memory_space<vmem>>, vector<8x128xf32>,
    return
  }
}

</mosaic_0001>

<llo_original>
// kernel: tpu_custom_call.1
$region0: #{tpu_custom_call.1}
  #allocation0 [shape = 'u32[]', space=smem, size = 0x4, offset = 0x4, fixed_abs, tag = 'smem constant byte address 0x4 - core index']
  #allocation1 [shape = 'u32[72,128]{1,0:T(1,128)}', space=vmem, size = 0x9000, scoped, tag = 'internal scratch']
  %s0 = inlined_call_operand.hbm [shape: f32[8,16], index: 0, kind: input, shape index: {}]
  %s1 = inlined_call_operand.hbm [shape: f32[16,128], index: 1, kind: input, shape index: {}]
  %s2 = inlined_call_operand.vmem [shape: f32[1,128], index: 2, kind: input, shape index: {}]
  %s3 = inlined_call_operand.hbm [shape: f32[128,128], index: 3, kind: input, shape index: {}]
  %s4 = inlined_call_operand.vmem [shape: f32[1,128], index: 4, kind: input, shape index: {}]
  %s5 = inlined_call_operand.hbm [shape: f32[128,128], index: 5, kind: input, shape index: {}]
  %s6 = inlined_call_operand.vmem [shape: f32[1,128], index: 6, kind: input, shape index: {}]
  %s7 = inlined_call_operand.hbm [shape: f32[128,128], index: 7, kind: input, shape index: {}]
  %s8 = inlined_call_operand.vmem [shape: f32[1,128], index: 8, kind: input, shape index: {}]
  %s9 = inlined_call_operand.hbm [shape: f32[8,128], index: 9, kind: output, shape index: {}]
  %s10 = sld [smem:[#allocation0]]
  $region66: #{tpu_custom_call.1} parent=0
    _
  %s12 = ssub.s32 1, %s10
  %s13 = scalar_select 0, %s12, %s10
  $region1: #{tpu_custom_call.1} parent=0
    #allocation2 [shape = 'u8[4096]{0}', space=vmem, size = 0x1000, scoped, tag = 'input window, operand 0, single buffered']
    #allocation3 [shape = 's32[1]{0}', space=sflag, size = 0x4, scoped, tag = 'scoped memory for tpu_custom_call.1']
    #allocation4 [shape = 's32[1]{0}', space=sflag, size = 0x4, scoped, tag = 'scoped memory for tpu_custom_call.1']
    #allocation5 [shape = 'u8[8192]{0}', space=vmem, size = 0x2000, scoped, tag = 'input window, operand 1, single buffered']
    #allocation6 [shape = 's32[1]{0}', space=sflag, size = 0x4, scoped, tag = 'scoped memory for tpu_custom_call.1']
    #allocation7 [shape = 'u8[65536]{0}', space=vmem, size = 0x10000, scoped, tag = 'input window, operand 3, single buffered']
    #allocation8 [shape = 'u8[65536]{0}', space=vmem, size = 0x10000, scoped, tag = 'input window, operand 5, single buffered']
    #allocation9 [shape = 's32[1]{0}', space=sflag, size = 0x4, scoped, tag = 'scoped memory for tpu_custom_call.1']
    #allocation10 [shape = 'u8[65536]{0}', space=vmem, size = 0x10000, scoped, tag = 'input window, operand 7, single buffered']
    #allocation11 [shape = 'u8[4096]{0}', space=vmem, size = 0x1000, scoped, tag = 'output window, operand 0, single buffered']
    %14 = vsyncpa [#allocation3], 0
    %15 = vsyncpa [#allocation6], 0
    %16 = vsyncpa [#allocation9], 0
    %17 = vsyncpa [#allocation4], 0
    // Predicated region
    $region2: #{tpu_custom_call.1} parent=1 // pred_check
      _
    $region3: #{tpu_custom_call.1} parent=1 // pred_check_branch
      %19 = sbr.rel (0) target = $region5
    $region4: #{tpu_custom_call.1} parent=1 // pred_region
      %21 = vsyncadd [#allocation3], 0
      %s23 = sshll.u32 %s0, 4
      %s24 = int_to_ptr.hbm [resolvable:$true] %s23
      %s25 = sshll.u32 [#allocation2], 4
      %s26 = int_to_ptr.vmem [resolvable:$true] %s25
      %28 = dma.hbm_to_vmem [thread:$0]  %s24, 128, %s26, [#allocation3]
    $region5: #{tpu_custom_call.1} parent=1 // pred_fallthru
      _
    // Predicated region
    $region6: #{tpu_custom_call.1} parent=1 // pred_check
      _
    $region7: #{tpu_custom_call.1} parent=1 // pred_check_branch
      %30 = sbr.rel (0) target = $region9
    $region8: #{tpu_custom_call.1} parent=1 // pred_region
      %32 = vsyncadd [#allocation6], 0
      %s33 = sshll.u32 %s1, 4
      %s34 = int_to_ptr.hbm [resolvable:$true] %s33
      %s35 = sshll.u32 [#allocation5], 4
      %s36 = int_to_ptr.vmem [resolvable:$true] %s35
      %41 = dma.hbm_to_vmem [thread:$0]  %s34, 256, %s36, [#allocation6], 128, 128, 8
    $region9: #{tpu_custom_call.1} parent=1 // pred_fallthru
      _
    // Predicated region
    $region10: #{tpu_custom_call.1} parent=1 // pred_check
      _
    $region11: #{tpu_custom_call.1} parent=1 // pred_check_branch
      %43 = sbr.rel (0) target = $region13
    $region12: #{tpu_custom_call.1} parent=1 // pred_region
      _
    $region13: #{tpu_custom_call.1} parent=1 // pred_fallthru
      _
    // Predicated region
    $region14: #{tpu_custom_call.1} parent=1 // pred_check
      _
    $region15: #{tpu_custom_call.1} parent=1 // pred_check_branch
      %45 = sbr.rel (0) target = $region17
    $region16: #{tpu_custom_call.1} parent=1 // pred_region
      %47 = vsyncadd [#allocation6], 0
      %s48 = sshll.u32 %s3, 4
      %s49 = int_to_ptr.hbm [resolvable:$true] %s48
      %s50 = sshll.u32 [#allocation7], 4
      %s51 = int_to_ptr.vmem [resolvable:$true] %s50
      %56 = dma.hbm_to_vmem [thread:$0]  %s49, 2048, %s51, [#allocation6], 128, 128, 8
    $region17: #{tpu_custom_call.1} parent=1 // pred_fallthru
      _
    // Predicated region
    $region18: #{tpu_custom_call.1} parent=1 // pred_check
      _
    $region19: #{tpu_custom_call.1} parent=1 // pred_check_branch
      %58 = sbr.rel (0) target = $region21
    $region20: #{tpu_custom_call.1} parent=1 // pred_region
      _
    $region21: #{tpu_custom_call.1} parent=1 // pred_fallthru
      _
    // Predicated region
    $region22: #{tpu_custom_call.1} parent=1 // pred_check
      _
    $region23: #{tpu_custom_call.1} parent=1 // pred_check_branch
      %60 = sbr.rel (0) target = $region25
    $region24: #{tpu_custom_call.1} parent=1 // pred_region
      %62 = vsyncadd [#allocation9], 0
      %s63 = sshll.u32 %s5, 4
      %s64 = int_to_ptr.hbm [resolvable:$true] %s63
      %s65 = sshll.u32 [#allocation8], 4
      %s66 = int_to_ptr.vmem [resolvable:$true] %s65
      %71 = dma.hbm_to_vmem [thread:$0]  %s64, 2048, %s66, [#allocation9], 128, 128, 8
    $region25: #{tpu_custom_call.1} parent=1 // pred_fallthru
      _
    // Predicated region
    $region26: #{tpu_custom_call.1} parent=1 // pred_check
      _
    $region27: #{tpu_custom_call.1} parent=1 // pred_check_branch
      %73 = sbr.rel (0) target = $region29
    $region28: #{tpu_custom_call.1} parent=1 // pred_region
      _
    $region29: #{tpu_custom_call.1} parent=1 // pred_fallthru
      _
    // Predicated region
    $region30: #{tpu_custom_call.1} parent=1 // pred_check
      _
    $region31: #{tpu_custom_call.1} parent=1 // pred_check_branch
      %75 = sbr.rel (0) target = $region33
    $region32: #{tpu_custom_call.1} parent=1 // pred_region
      %77 = vsyncadd [#allocation9], 0
      %s78 = sshll.u32 %s7, 4
      %s79 = int_to_ptr.hbm [resolvable:$true] %s78
      %s80 = sshll.u32 [#allocation10], 4
      %s81 = int_to_ptr.vmem [resolvable:$true] %s80
      %86 = dma.hbm_to_vmem [thread:$0]  %s79, 2048, %s81, [#allocation9], 128, 128, 8
    $region33: #{tpu_custom_call.1} parent=1 // pred_fallthru
      _
    // Predicated region
    $region34: #{tpu_custom_call.1} parent=1 // pred_check
      _
    $region35: #{tpu_custom_call.1} parent=1 // pred_check_branch
      %88 = sbr.rel (0) target = $region37
    $region36: #{tpu_custom_call.1} parent=1 // pred_region
      _
    $region37: #{tpu_custom_call.1} parent=1 // pred_fallthru
      _
    // Predicated region
    $region38: #{tpu_custom_call.1} parent=1 // pred_check
      _
    $region39: #{tpu_custom_call.1} parent=1 // pred_check_branch
      %90 = sbr.rel (0) target = $region41
    $region40: #{tpu_custom_call.1} parent=1 // pred_region
      %92 = dma.done [#allocation3], 128
    $region41: #{tpu_custom_call.1} parent=1 // pred_fallthru
      _
    // Predicated region
    $region42: #{tpu_custom_call.1} parent=1 // pred_check
      _
    $region43: #{tpu_custom_call.1} parent=1 // pred_check_branch
      %94 = sbr.rel (0) target = $region45
    $region44: #{tpu_custom_call.1} parent=1 // pred_region
      %96 = dma.done [#allocation6], 256
    $region45: #{tpu_custom_call.1} parent=1 // pred_fallthru
      _
    // Predicated region
    $region46: #{tpu_custom_call.1} parent=1 // pred_check
      _
    $region47: #{tpu_custom_call.1} parent=1 // pred_check_branch
      %98 = sbr.rel (0) target = $region49
    $region48: #{tpu_custom_call.1} parent=1 // pred_region
      %100 = dma.done [#allocation6], 2048
    $region49: #{tpu_custom_call.1} parent=1 // pred_fallthru
      _
    // Predicated region
    $region50: #{tpu_custom_call.1} parent=1 // pred_check
      _
    $region51: #{tpu_custom_call.1} parent=1 // pred_check_branch
      %102 = sbr.rel (0) target = $region53
    $region52: #{tpu_custom_call.1} parent=1 // pred_region
      %104 = dma.done [#allocation9], 2048
    $region53: #{tpu_custom_call.1} parent=1 // pred_fallthru
      _
    // Predicated region
    $region54: #{tpu_custom_call.1} parent=1 // pred_check
      _
    $region55: #{tpu_custom_call.1} parent=1 // pred_check_branch
      %106 = sbr.rel (0) target = $region57
    $region56: #{tpu_custom_call.1} parent=1 // pred_region
      %108 = dma.done [#allocation9], 2048
    $region57: #{tpu_custom_call.1} parent=1 // pred_fallthru
      _
    %v109 = vld [vmem:[#allocation2] sm:$0xff]
    %v110 = vld [vmem:[#allocation5] sm:$0xff]
    %v111 = vld [vmem:[#allocation5 + $0x8] sm:$0xff]
    %v112 = vld [vmem:[%s2] sm:$0x1]
    %v114 = vperm.slane %v112, 0
    %vm116 = vcmask 130048
    %v118 = vsel %vm116, %v109, 0
    %120 = vmatpush.msra.mxu0 0.0
    %121 = vmatpush.msra.mxu0 0.0
    %122 = vmatpush.msra.mxu0 0.0
    %123 = vmatpush.msra.mxu0 0.0
    %124 = vmatpush.msra.mxu0 0.0
    %125 = vmatpush.msra.mxu0 0.0
    %126 = vmatpush.msra.mxu0 0.0
    %127 = vmatpush.msra.mxu0 0.0
    %128 = vmatpush.msra.mxu0 0.0
    %129 = vmatpush.msra.mxu0 0.0
    %130 = vmatpush.msra.mxu0 0.0
    %131 = vmatpush.msra.mxu0 0.0
    %132 = vmatpush.msra.mxu0 0.0
    %133 = vmatpush.msra.mxu0 0.0
    %134 = vmatpush.msra.mxu0 %v111
    %135 = vmatpush.msra.mxu0 %v110
    %136 = vmatmul.f32.gmra.mxu0 %v118
    %v137 = vpop.f32.mrf.mxu0
    %v138 = vadd.f32 %v114, %v137
    %139 = vdwg.mxu0
    %v140 = vmul.f32 %v138, 0.01
    %v141 = vmax.f32 %v138, %v140
    %v142 = vrot.slane %v141, 4
    %v143 = vadd.f32 %v141, %v142
    %v144 = vrot.slane %v143, 2
    %v145 = vadd.f32 %v143, %v144
    %v146 = vrot.slane %v145, 1
    %v147 = vadd.f32 %v145, %v146
    %v148 = vmul.f32 %v141, %v141
    %v149 = vrot.slane %v148, 4
    %v150 = vadd.f32 %v148, %v149
    %v151 = vrot.slane %v150, 2
    %v152 = vadd.f32 %v150, %v151
    %v153 = vrot.slane %v152, 1
    %v154 = vadd.f32 %v152, %v153
    %v155 = vmul.f32 %v147, 0.125
    %v156 = vmul.f32 %v154, 0.125
    %v157 = vmul.f32 %v155, %v155
    %v158 = vsub.f32 %v156, %v157
    %v159 = vmax.f32 %v158, 0.0
    %v160 = vadd.f32 %v159, 1e-05
    %v161 = vrsqrt.pop %v160
    %v162 = vmul.f32 %v161, %v160
    %v163 = vmul.f32 %v162, %v161
    %v164 = vmul.f32 0.5, %v163
    %v165 = vsub.f32 1.5, %v164
    %v166 = vmul.f32 %v161, %v165
    %vm167 = vweird.f32 %v160
    %vm168 = vweird.f32 %v161
    %vm169 = vmor %vm167, %vm168
    %v170 = vsel %vm169, %v161, %v166
    %v171 = vld [vmem:[#allocation7] sm:$0xff]
    %v172 = vld [vmem:[#allocation7 + $0x8] sm:$0xff]
    %v173 = vld [vmem:[#allocation7 + $0x10] sm:$0xff]
    %v174 = vld [vmem:[#allocation7 + $0x18] sm:$0xff]
    %v175 = vld [vmem:[#allocation7 + $0x20] sm:$0xff]
    %v176 = vld [vmem:[#allocation7 + $0x28] sm:$0xff]
    %v177 = vld [vmem:[#allocation7 + $0x30] sm:$0xff]
    %v178 = vld [vmem:[#allocation7 + $0x38] sm:$0xff]
    %v179 = vld [vmem:[#allocation7 + $0x40] sm:$0xff]
    %v180 = vld [vmem:[#allocation7 + $0x48] sm:$0xff]
    %v181 = vld [vmem:[#allocation7 + $0x50] sm:$0xff]
    %v182 = vld [vmem:[#allocation7 + $0x58] sm:$0xff]
    %v183 = vld [vmem:[#allocation7 + $0x60] sm:$0xff]
    %v184 = vld [vmem:[#allocation7 + $0x68] sm:$0xff]
    %v185 = vld [vmem:[#allocation7 + $0x70] sm:$0xff]
    %v186 = vld [vmem:[#allocation7 + $0x78] sm:$0xff]
    %v187 = vld [vmem:[%s4] sm:$0x1]
    %v188 = vmul.f32 %v155, %v170
    %189 = vmatpush.msra.mxu0 %v186
    %190 = vmatpush.msra.mxu0 %v185
    %191 = vmatpush.msra.mxu0 %v184
    %192 = vmatpush.msra.mxu0 %v183
    %193 = vmatpush.msra.mxu0 %v182
    %194 = vmatpush.msra.mxu0 %v181
    %195 = vmatpush.msra.mxu0 %v180
    %196 = vmatpush.msra.mxu0 %v179
    %197 = vmatpush.msra.mxu0 %v178
    %198 = vmatpush.msra.mxu0 %v177
    %199 = vmatpush.msra.mxu0 %v176
    %200 = vmatpush.msra.mxu0 %v175
    %201 = vmatpush.msra.mxu0 %v174
    %202 = vmatpush.msra.mxu0 %v173
    %203 = vmatpush.msra.mxu0 %v172
    %204 = vmatpush.msra.mxu0 %v171
    %205 = vmatmul.f32.gmra.mxu0 %v188
    %v206 = vpop.f32.mrf.mxu0
    %v207 = vadd.f32 0.0, %v206
    %208 = vdwg.mxu0
    %v209 = vsub.f32 %v187, %v207
    %v210 = vmul.f32 %v141, %v170
    %v212 = vperm.slane %v209, 0
    %214 = vmatpush.msra.mxu0 %v186
    %215 = vmatpush.msra.mxu0 %v185
    %216 = vmatpush.msra.mxu0 %v184
    %217 = vmatpush.msra.mxu0 %v183
    %218 = vmatpush.msra.mxu0 %v182
    %219 = vmatpush.msra.mxu0 %v181
    %220 = vmatpush.msra.mxu0 %v180
    %221 = vmatpush.msra.mxu0 %v179
    %222 = vmatpush.msra.mxu0 %v178
    %223 = vmatpush.msra.mxu0 %v177
    %224 = vmatpush.msra.mxu0 %v176
    %225 = vmatpush.msra.mxu0 %v175
    %226 = vmatpush.msra.mxu0 %v174
    %227 = vmatpush.msra.mxu0 %v173
    %228 = vmatpush.msra.mxu0 %v172
    %229 = vmatpush.msra.mxu0 %v171
    %230 = vmatmul.f32.gmra.mxu0 %v210
    %v231 = vpop.f32.mrf.mxu0
    %v232 = vadd.f32 %v212, %v231
    %233 = vdwg.mxu0
    %v234 = vmul.f32 %v232, 0.01
    %v235 = vmax.f32 %v232, %v234
    %v236 = vrot.slane %v235, 4
    %v237 = vadd.f32 %v235, %v236
    %v238 = vrot.slane %v237, 2
    %v239 = vadd.f32 %v237, %v238
    %v240 = vrot.slane %v239, 1
    %v241 = vadd.f32 %v239, %v240
    %v242 = vmul.f32 %v235, %v235
    %v243 = vrot.slane %v242, 4
    %v244 = vadd.f32 %v242, %v243
    %v245 = vrot.slane %v244, 2
    %v246 = vadd.f32 %v244, %v245
    %v247 = vrot.slane %v246, 1
    %v248 = vadd.f32 %v246, %v247
    %v249 = vmul.f32 %v241, 0.125
    %v250 = vmul.f32 %v248, 0.125
    %v251 = vmul.f32 %v249, %v249
    %v252 = vsub.f32 %v250, %v251
    %v253 = vmax.f32 %v252, 0.0
    %v254 = vadd.f32 %v253, 1e-05
    %v255 = vrsqrt.pop %v254
    %v256 = vmul.f32 %v255, %v254
    %v257 = vmul.f32 %v256, %v255
    %v258 = vmul.f32 0.5, %v257
    %v259 = vsub.f32 1.5, %v258
    %v260 = vmul.f32 %v255, %v259
    %vm261 = vweird.f32 %v254
    %vm262 = vweird.f32 %v255
    %vm263 = vmor %vm261, %vm262
    %v264 = vsel %vm263, %v255, %v260
    %v265 = vld [vmem:[#allocation8] sm:$0xff]
    %v266 = vld [vmem:[#allocation8 + $0x8] sm:$0xff]
    %v267 = vld [vmem:[#allocation8 + $0x10] sm:$0xff]
    %v268 = vld [vmem:[#allocation8 + $0x18] sm:$0xff]
    %v269 = vld [vmem:[#allocation8 + $0x20] sm:$0xff]
    %v270 = vld [vmem:[#allocation8 + $0x28] sm:$0xff]
    %v271 = vld [vmem:[#allocation8 + $0x30] sm:$0xff]
    %v272 = vld [vmem:[#allocation8 + $0x38] sm:$0xff]
    %v273 = vld [vmem:[#allocation8 + $0x40] sm:$0xff]
    %v274 = vld [vmem:[#allocation8 + $0x48] sm:$0xff]
    %v275 = vld [vmem:[#allocation8 + $0x50] sm:$0xff]
    %v276 = vld [vmem:[#allocation8 + $0x58] sm:$0xff]
    %v277 = vld [vmem:[#allocation8 + $0x60] sm:$0xff]
    %v278 = vld [vmem:[#allocation8 + $0x68] sm:$0xff]
    %v279 = vld [vmem:[#allocation8 + $0x70] sm:$0xff]
    %v280 = vld [vmem:[#allocation8 + $0x78] sm:$0xff]
    %v281 = vld [vmem:[%s6] sm:$0x1]
    %v282 = vmul.f32 %v249, %v264
    %283 = vmatpush.msra.mxu0 %v280
    %284 = vmatpush.msra.mxu0 %v279
    %285 = vmatpush.msra.mxu0 %v278
    %286 = vmatpush.msra.mxu0 %v277
    %287 = vmatpush.msra.mxu0 %v276
    %288 = vmatpush.msra.mxu0 %v275
    %289 = vmatpush.msra.mxu0 %v274
    %290 = vmatpush.msra.mxu0 %v273
    %291 = vmatpush.msra.mxu0 %v272
    %292 = vmatpush.msra.mxu0 %v271
    %293 = vmatpush.msra.mxu0 %v270
    %294 = vmatpush.msra.mxu0 %v269
    %295 = vmatpush.msra.mxu0 %v268
    %296 = vmatpush.msra.mxu0 %v267
    %297 = vmatpush.msra.mxu0 %v266
    %298 = vmatpush.msra.mxu0 %v265
    %299 = vmatmul.f32.gmra.mxu0 %v282
    %v300 = vpop.f32.mrf.mxu0
    %v301 = vadd.f32 0.0, %v300
    %302 = vdwg.mxu0
    %v303 = vsub.f32 %v281, %v301
    %v304 = vmul.f32 %v235, %v264
    %v306 = vperm.slane %v303, 0
    %308 = vmatpush.msra.mxu0 %v280
    %309 = vmatpush.msra.mxu0 %v279
    %310 = vmatpush.msra.mxu0 %v278
    %311 = vmatpush.msra.mxu0 %v277
    %312 = vmatpush.msra.mxu0 %v276
    %313 = vmatpush.msra.mxu0 %v275
    %314 = vmatpush.msra.mxu0 %v274
    %315 = vmatpush.msra.mxu0 %v273
    %316 = vmatpush.msra.mxu0 %v272
    %317 = vmatpush.msra.mxu0 %v271
    %318 = vmatpush.msra.mxu0 %v270
    %319 = vmatpush.msra.mxu0 %v269
    %320 = vmatpush.msra.mxu0 %v268
    %321 = vmatpush.msra.mxu0 %v267
    %322 = vmatpush.msra.mxu0 %v266
    %323 = vmatpush.msra.mxu0 %v265
    %324 = vmatmul.f32.gmra.mxu0 %v304
    %v325 = vpop.f32.mrf.mxu0
    %v326 = vadd.f32 %v306, %v325
    %327 = vdwg.mxu0
    %v328 = vmul.f32 %v326, 0.01
    %v329 = vmax.f32 %v326, %v328
    %v330 = vrot.slane %v329, 4
    %v331 = vadd.f32 %v329, %v330
    %v332 = vrot.slane %v331, 2
    %v333 = vadd.f32 %v331, %v332
    %v334 = vrot.slane %v333, 1
    %v335 = vadd.f32 %v333, %v334
    %v336 = vmul.f32 %v329, %v329
    %v337 = vrot.slane %v336, 4
    %v338 = vadd.f32 %v336, %v337
    %v339 = vrot.slane %v338, 2
    %v340 = vadd.f32 %v338, %v339
    %v341 = vrot.slane %v340, 1
    %v342 = vadd.f32 %v340, %v341
    %v343 = vmul.f32 %v335, 0.125
    %v344 = vmul.f32 %v342, 0.125
    %v345 = vmul.f32 %v343, %v343
    %v346 = vsub.f32 %v344, %v345
    %v347 = vmax.f32 %v346, 0.0
    %v348 = vadd.f32 %v347, 1e-05
    %v349 = vrsqrt.pop %v348
    %v350 = vmul.f32 %v349, %v348
    %v351 = vmul.f32 %v350, %v349
    %v352 = vmul.f32 0.5, %v351
    %v353 = vsub.f32 1.5, %v352
    %v354 = vmul.f32 %v349, %v353
    %vm355 = vweird.f32 %v348
    %vm356 = vweird.f32 %v349
    %vm357 = vmor %vm355, %vm356
    %v358 = vsel %vm357, %v349, %v354
    %v359 = vld [vmem:[#allocation10] sm:$0xff]
    %v360 = vld [vmem:[#allocation10 + $0x8] sm:$0xff]
    %v361 = vld [vmem:[#allocation10 + $0x10] sm:$0xff]
    %v362 = vld [vmem:[#allocation10 + $0x18] sm:$0xff]
    %v363 = vld [vmem:[#allocation10 + $0x20] sm:$0xff]
    %v364 = vld [vmem:[#allocation10 + $0x28] sm:$0xff]
    %v365 = vld [vmem:[#allocation10 + $0x30] sm:$0xff]
    %v366 = vld [vmem:[#allocation10 + $0x38] sm:$0xff]
    %v367 = vld [vmem:[#allocation10 + $0x40] sm:$0xff]
    %v368 = vld [vmem:[#allocation10 + $0x48] sm:$0xff]
    %v369 = vld [vmem:[#allocation10 + $0x50] sm:$0xff]
    %v370 = vld [vmem:[#allocation10 + $0x58] sm:$0xff]
    %v371 = vld [vmem:[#allocation10 + $0x60] sm:$0xff]
    %v372 = vld [vmem:[#allocation10 + $0x68] sm:$0xff]
    %v373 = vld [vmem:[#allocation10 + $0x70] sm:$0xff]
    %v374 = vld [vmem:[#allocation10 + $0x78] sm:$0xff]
    %v375 = vld [vmem:[%s8] sm:$0x1]
    %v376 = vmul.f32 %v343, %v358
    %377 = vmatpush.msra.mxu0 %v374
    %378 = vmatpush.msra.mxu0 %v373
    %379 = vmatpush.msra.mxu0 %v372
    %380 = vmatpush.msra.mxu0 %v371
    %381 = vmatpush.msra.mxu0 %v370
    %382 = vmatpush.msra.mxu0 %v369
    %383 = vmatpush.msra.mxu0 %v368
    %384 = vmatpush.msra.mxu0 %v367
    %385 = vmatpush.msra.mxu0 %v366
    %386 = vmatpush.msra.mxu0 %v365
    %387 = vmatpush.msra.mxu0 %v364
    %388 = vmatpush.msra.mxu0 %v363
    %389 = vmatpush.msra.mxu0 %v362
    %390 = vmatpush.msra.mxu0 %v361
    %391 = vmatpush.msra.mxu0 %v360
    %392 = vmatpush.msra.mxu0 %v359
    %393 = vmatmul.f32.gmra.mxu0 %v376
    %v394 = vpop.f32.mrf.mxu0
    %v395 = vadd.f32 0.0, %v394
    %396 = vdwg.mxu0
    %v397 = vsub.f32 %v375, %v395
    %v398 = vmul.f32 %v329, %v358
    %v400 = vperm.slane %v397, 0
    %402 = vmatpush.msra.mxu0 %v374
    %403 = vmatpush.msra.mxu0 %v373
    %404 = vmatpush.msra.mxu0 %v372
    %405 = vmatpush.msra.mxu0 %v371
    %406 = vmatpush.msra.mxu0 %v370
    %407 = vmatpush.msra.mxu0 %v369
    %408 = vmatpush.msra.mxu0 %v368
    %409 = vmatpush.msra.mxu0 %v367
    %410 = vmatpush.msra.mxu0 %v366
    %411 = vmatpush.msra.mxu0 %v365
    %412 = vmatpush.msra.mxu0 %v364
    %413 = vmatpush.msra.mxu0 %v363
    %414 = vmatpush.msra.mxu0 %v362
    %415 = vmatpush.msra.mxu0 %v361
    %416 = vmatpush.msra.mxu0 %v360
    %417 = vmatpush.msra.mxu0 %v359
    %418 = vmatmul.f32.gmra.mxu0 %v398
    %v419 = vpop.f32.mrf.mxu0
    %v420 = vadd.f32 %v400, %v419
    %421 = vdwg.mxu0
    %v422 = vlaneseq
    %v423 = vand.u32 %v422, 127
    %vm424 = vcmp.ge.s32.totalorder %v423, 1
    %vm425 = vcmp.le.s32.totalorder %v423, 4
    %vm426 = vmand %vm424, %vm425
    %v427 = vsel %vm426, 1, 0
    %vm428 = vcmp.eq.s32.totalorder %v427, 1
    %v429 = vsel %vm428, %v420, -1e+30
    %430 = vmax.xlane.f32.xlu0 %v429
    %v431 = vpop.xlane.xlu0 %430
    %v432 = vsub.f32 %v429, %v431
    %v433 = vmul.f32 %v432, 1.442695
    %v434 = vpow.pop %v433
    %435 = vadd.xlane.f32.xlu0 %v434
    %v436 = vpop.xlane.xlu0 %435
    %v437 = vlog2.pop %v436
    %v438 = vmul.f32 %v437, 0.6931472
    %v439 = vadd.f32 %v431, %v438
    %v440 = vsub.f32 %v420, %v439
    %vm441 = vcmp.eq.s32.totalorder %v423, 0
    %v442 = vsel %vm441, 1, 0
    %vm443 = vcmp.eq.s32.totalorder %v442, 1
    %v444 = vsel %vm443, %v420, %v440
    %445 = vst [vmem:[#allocation11] sm:$0xff] %v444
    // Predicated region
    $region58: #{tpu_custom_call.1} parent=1 // pred_check
      _
    $region59: #{tpu_custom_call.1} parent=1 // pred_check_branch
      %447 = sbr.rel (0) target = $region61
    $region60: #{tpu_custom_call.1} parent=1 // pred_region
      %449 = vsyncadd [#allocation4], 0
      %s451 = sshll.u32 [#allocation11], 4
      %s452 = int_to_ptr.vmem [resolvable:$true] %s451
      %s453 = sshll.u32 %s9, 4
      %s454 = int_to_ptr.hbm [resolvable:$true] %s453
      %456 = dma.vmem_to_hbm [thread:$0]  %s452, 128, %s454, [#allocation4]
    $region61: #{tpu_custom_call.1} parent=1 // pred_fallthru
      _
    // Predicated region
    $region62: #{tpu_custom_call.1} parent=1 // pred_check
      _
    $region63: #{tpu_custom_call.1} parent=1 // pred_check_branch
      %458 = sbr.rel (0) target = $region65
    $region64: #{tpu_custom_call.1} parent=1 // pred_region
      %460 = dma.done [#allocation4], 128
    $region65: #{tpu_custom_call.1} parent=1 // pred_fallthru
      _
    %461 = vsyncpa [#allocation3], 1
    %462 = vsyncpa [#allocation6], 1
    %463 = vsyncpa [#allocation9], 1
    %464 = vsyncpa [#allocation4], 1

</llo_original>
